<compile_context>
chip_gen: v7x
topology: tpu7x:2x2x1
jax: 0.10.0
libtpu: 0.0.40
codegen_flags: <defaults>
</compile_context>

<pallas_src>
import functools
import math

import jax
import jax.numpy as jnp
from jax.experimental import pallas as pl
from jax.experimental.pallas import tpu as pltpu


def make_positional_encoding(d_model, max_seq_len=35, dtype=jnp.float32):
    """Builds the PE buffer exactly as the PyTorch __init__ double loop does."""
    pos = jnp.arange(max_seq_len, dtype=jnp.float32)[:, None]            # (L, 1)
    i_even = jnp.arange(0, d_model, 2, dtype=jnp.float32)[None, :]       # (1, D/2)
    sin_part = jnp.sin(pos / 10000.0 ** (2.0 * i_even / d_model))        # cols 0,2,4,...
    cos_part = jnp.cos(pos / 10000.0 ** (2.0 * (i_even + 1.0) / d_model))  # cols 1,3,5,...
    pe = jnp.stack([sin_part, cos_part], axis=-1).reshape(max_seq_len, d_model)
    return pe.astype(dtype)


def _pos_enc_kernel(x_ref, pe_ref, o_ref, *, scale):
    # x_ref : (Bt, S*D)   pe_ref : (1, S*D)   o_ref : (Bt, S*D)
    # Single fused elementwise pass: scale + broadcast add, lane-dense store.
    o_ref[...] = x_ref[...] * scale + pe_ref[...]


def positional_encoder(x, pe, *, block_b=8):
    """x: (B, S, D) ; pe: (max_seq_len, D) buffer. Returns x*sqrt(D) + pe[:S]."""
    B, S, D = x.shape
    assert pe.shape[1] == D and pe.shape[0] >= S, "seq_len exceeds max_seq_len"
    scale = math.sqrt(D)  # sqrt(d_model)

    # Flatten (S, D) -> S*D so the lane axis is large and stores are unmasked.
    x2 = x.reshape(B, S * D)
    pe2 = pe[:S].astype(x.dtype).reshape(1, S * D)

    # Batch tile: biggest clean divisor of B up to block_b (single grid step at
    # small B), amortizing per-grid-step dispatch/pipeline overhead.
    Bt = block_b if (B % block_b == 0) else B
    grid = (B // Bt,)

    out = pl.pallas_call(
        functools.partial(_pos_enc_kernel, scale=scale),
        out_shape=jax.ShapeDtypeStruct((B, S * D), x.dtype),
        grid_spec=pltpu.PrefetchScalarGridSpec(
            num_scalar_prefetch=0,
            grid=grid,
            in_specs=[
                pl.BlockSpec((Bt, S * D), lambda b: (b, 0)),
                pl.BlockSpec((1, S * D), lambda b: (0, 0)),
            ],
            out_specs=pl.BlockSpec((Bt, S * D), lambda b: (b, 0)),
        ),
        compiler_params=pltpu.CompilerParams(
            dimension_semantics=("parallel",)),
    )(x2, pe2)
    return out.reshape(B, S, D)


def _reference(x, pe):
    """Plain-JAX reference of the PyTorch forward."""
    B, S, D = x.shape
    return x * math.sqrt(D) + pe[None, :S].astype(x.dtype)


if __name__ == "__main__":
    # Small shapes consistent with the module: batch=2, seq_len=8, d_model=32,
    # max_seq_len=35 (module default).
    B, S, D = 2, 8, 32
    MAX_SEQ_LEN = 35

    key = jax.random.PRNGKey(0)
    x = jax.random.normal(key, (B, S, D), dtype=jnp.float32)

    pe = make_positional_encoding(D, max_seq_len=MAX_SEQ_LEN, dtype=jnp.float32)

    out = positional_encoder(x, pe)
    out = jax.block_until_ready(out)

    ref = _reference(x, pe)
    assert out.shape == (B, S, D)
    assert jnp.allclose(out, ref, atol=1e-5, rtol=1e-5), "mismatch vs reference"

    print("KERNEL_OK")
</pallas_src>

<mosaic_0001>
module attributes {stable_mosaic.version = 11 : i64} {
  func.func @_pos_enc_kernel(%arg0: i32, %arg1: memref<2x256xf32, #tpu.memory_space<vmem>>, %arg2: memref<1x256xf32, #tpu.memory_space<vmem>>, %arg3: memref<2x256xf32, #tpu.memory_space<vmem>>) attributes {dimension_semantics = [#tpu.dimension_semantics<parallel>], iteration_bounds = array<i64: 1>, scalar_prefetch = 0 : i64, scratch_operands = 0 : i64, tpu.core_type = #tpu.core_type<tc>, window_params = [{transform_indices = @transform_0, window_bounds = array<i64: 2, 256>}, {pipeline_mode = #tpu.pipeline_mode<synchronous>, transform_indices = @transform_1, window_bounds = array<i64: 1, 256>}, {transform_indices = @transform_2, window_bounds = array<i64: 2, 256>}]} {
    %c0 = arith.constant 0 : index
    %c0_0 = arith.constant 0 : index
    %0 = vector.load %arg1[%c0, %c0_0] : memref<2x256xf32, #tpu.memory_space<vmem>>, vector<2x256xf32>
    %cst = arith.constant 5.65685415 : f32
    %1 = vector.broadcast %cst : f32 to vector<2x256xf32>
    %2 = arith.mulf %0, %1 : vector<2x256xf32>
    %c0_1 = arith.constant 0 : index
    %c0_2 = arith.constant 0 : index
    %3 = vector.load %arg2[%c0_1, %c0_2] : memref<1x256xf32, #tpu.memory_space<vmem>>, vector<1x256xf32>
    %4 = vector.broadcast %3 : vector<1x256xf32> to vector<2x256xf32>
    %5 = arith.addf %2, %4 : vector<2x256xf32>
    %c0_3 = arith.constant 0 : index
    %c0_4 = arith.constant 0 : index
    %6 = vector.load %arg3[%c0_3, %c0_4] : memref<2x256xf32, #tpu.memory_space<vmem>>, vector<2x256xf32>
    tpu.vector_store %arg3[%c0_3, %c0_4], %5 {strides = array<i32>} : memref<2x256xf32, #tpu.memory_space<vmem>>, vector<2x256xf32>,
    return
  }
  func.func @transform_0(%arg0: i32) -> (i32, i32) {
    %c0_i32 = arith.constant 0 : i32
    %c0_i32_0 = arith.constant 0 : i32
    return %arg0, %c0_i32 : i32, i32
  }
  func.func @transform_1(%arg0: i32) -> (i32, i32) {
    %c0_i32 = arith.constant 0 : i32
    %c0_i32_0 = arith.constant 0 : i32
    %c0_i32_1 = arith.constant 0 : i32
    return %c0_i32, %c0_i32_0 : i32, i32
  }
  func.func @transform_2(%arg0: i32) -> (i32, i32) {
    %c0_i32 = arith.constant 0 : i32
    %c0_i32_0 = arith.constant 0 : i32
    return %arg0, %c0_i32 : i32, i32
  }
}

</mosaic_0001>

<llo_original>
// kernel: tpu_custom_call.1
$region0: #{tpu_custom_call.1}
  #allocation0 [shape = 'u32[]', space=smem, size = 0x4, offset = 0x4, fixed_abs, tag = 'smem constant byte address 0x4 - core index']
  #allocation1 [shape = 'u32[144,128]{1,0:T(1,128)}', space=vmem, size = 0x12000, scoped, tag = 'internal scratch']
  %s0 = inlined_call_operand.hbm [shape: f32[2,256], index: 0, kind: input, shape index: {}]
  %s1 = inlined_call_operand.vmem [shape: f32[1,256], index: 1, kind: input, shape index: {}]
  %s2 = inlined_call_operand.hbm [shape: f32[2,256], index: 2, kind: output, shape index: {}]
  %s3 = sld [smem:[#allocation0]]
  $region22: #{tpu_custom_call.1} parent=0
    _
  %s5 = ssub.s32 1, %s3
  %s6 = scalar_select 0, %s5, %s3
  $region1: #{tpu_custom_call.1} parent=0
    #allocation2 [shape = 'u8[2048]{0}', space=vmem, size = 0x800, scoped, tag = 'input window, operand 0, single buffered']
    #allocation3 [shape = 's32[1]{0}', space=sflag, size = 0x4, scoped, tag = 'scoped memory for tpu_custom_call.1']
    #allocation4 [shape = 's32[1]{0}', space=sflag, size = 0x4, scoped, tag = 'scoped memory for tpu_custom_call.1']
    #allocation5 [shape = 'u8[2048]{0}', space=vmem, size = 0x800, scoped, tag = 'output window, operand 0, single buffered']
    %7 = vsyncpa [#allocation3], 0
    %8 = vsyncpa [#allocation4], 0
    // Predicated region
    $region2: #{tpu_custom_call.1} parent=1 // pred_check
      _
    $region3: #{tpu_custom_call.1} parent=1 // pred_check_branch
      %10 = sbr.rel (0) target = $region5
    $region4: #{tpu_custom_call.1} parent=1 // pred_region
      %s12 = ssub.s32 64, 64
      %13 = vsyncadd [#allocation3], %s12
      %s15 = sshll.u32 [#allocation2], 4
      %s16 = int_to_ptr.vmem [resolvable:$true] %s15
      %18 = dma.hbm_to_vmem [thread:$0]  %s0, 64, %s16, [#allocation3]
    $region5: #{tpu_custom_call.1} parent=1 // pred_fallthru
      _
    // Predicated region
    $region6: #{tpu_custom_call.1} parent=1 // pred_check
      _
    $region7: #{tpu_custom_call.1} parent=1 // pred_check_branch
      %20 = sbr.rel (0) target = $region9
    $region8: #{tpu_custom_call.1} parent=1 // pred_region
      _
    $region9: #{tpu_custom_call.1} parent=1 // pred_fallthru
      _
    // Predicated region
    $region10: #{tpu_custom_call.1} parent=1 // pred_check
      _
    $region11: #{tpu_custom_call.1} parent=1 // pred_check_branch
      %22 = sbr.rel (0) target = $region13
    $region12: #{tpu_custom_call.1} parent=1 // pred_region
      %23 = dma.done [#allocation3], 64
    $region13: #{tpu_custom_call.1} parent=1 // pred_fallthru
      _
    %v24 = vld [vmem:[#allocation2] sm:$0xf]
    %v25 = vmul.f32 %v24, 5.656854
    %v26 = vld [vmem:[%s1] sm:$0x3]
    %v28 = vlaneseq
    %v29 = vshrl.u32 %v28, 7
    %v30 = vsub.s32 0, %v29
    %v31 = vrot.slane %v26, %v30
    %v32 = vlaneseq
    %v33 = vshrl.u32 %v32, 7
    %v34 = vsub.s32 1, %v33
    %v35 = vrot.slane %v26, %v34
    %v36 = vcombine.low %v31, %v35
    %v38 = vunpack.c.l.s4 1983009808
    %v39 = vunpack.c.0.s8 %v38
    %v40 = vlaneseq
    %v41 = vshrl.u32 %v40, 7
    %v42 = vsub.s32 %v39, %v41
    %v43 = vrot.slane %v36, %v42
    %v45 = vadd.f32 %v25, %v43
    %46 = vst [vmem:[#allocation5] sm:$0xf] %v45
    // Predicated region
    $region14: #{tpu_custom_call.1} parent=1 // pred_check
      _
    $region15: #{tpu_custom_call.1} parent=1 // pred_check_branch
      %48 = sbr.rel (0) target = $region17
    $region16: #{tpu_custom_call.1} parent=1 // pred_region
      %s50 = ssub.s32 64, 64
      %51 = vsyncadd [#allocation4], %s50
      %s53 = sshll.u32 [#allocation5], 4
      %s54 = int_to_ptr.vmem [resolvable:$true] %s53
      %56 = dma.vmem_to_hbm [thread:$0]  %s54, 64, %s2, [#allocation4]
    $region17: #{tpu_custom_call.1} parent=1 // pred_fallthru
      _
    // Predicated region
    $region18: #{tpu_custom_call.1} parent=1 // pred_check
      _
    $region19: #{tpu_custom_call.1} parent=1 // pred_check_branch
      %58 = sbr.rel (0) target = $region21
    $region20: #{tpu_custom_call.1} parent=1 // pred_region
      %59 = dma.done [#allocation4], 64
    $region21: #{tpu_custom_call.1} parent=1 // pred_fallthru
      _
    %60 = vsyncpa [#allocation3], 1
    %61 = vsyncpa [#allocation4], 1

</llo_original>
